<compile_context>
chip_gen: v5e
topology: v5e:2x2
jax: 0.10.0
libtpu: 0.0.40
codegen_flags: <defaults>
</compile_context>

<pallas_src>
import math
from functools import partial

import jax
import jax.numpy as jnp
from jax import lax
from jax.experimental import pallas as pl
from jax.experimental.pallas import tpu as pltpu

INPUT_SIZE = 57
HIDDEN_SIZE = 64
OUTPUT_SIZE = 9
_INPUT_PAD = 64  # pad 57 -> 64 so the K dim of the input projection is aligned


def _bucket_len(t):
    """Round T up to a multiple of 16 (bf16 packs 16 sublanes per vreg)."""
    return max(16, ((t + 15) // 16) * 16)


def _lstm_classify_kernel(seq_ref, x_ref, wih_ref, whh_ref, b_ref, wlin_ref,
                          blin_ref, out_ref, h_out_ref, c_out_ref, xp_ref):
    """Full LSTM recurrence + linear head + log-softmax.

    seq_ref  : (1,) int32 SMEM   true sequence length (<= T_bucket)
    x_ref    : (T_bucket, 64)    time-major input (bf16), batch = 1, zero-padded
    wih_ref  : (64, 4*H)         W_ih^T (bf16), gate cols [i, f, o, 2*g]
    whh_ref  : (H, 4*H)          W_hh^T (bf16), gate cols [i, f, o, 2*g]
    b_ref    : (1, 4*H)          b_ih + b_hh (f32), same column order/scaling
    wlin_ref : (H, OUTPUT_SIZE)  linear weight^T (f32)
    blin_ref : (1, OUTPUT_SIZE)  linear bias (f32)
    out_ref  : (1, OUTPUT_SIZE)  log-softmax output
    h_out_ref: (1, H)            final hidden state h_T
    c_out_ref: (1, H)            final cell state   c_T
    xp_ref   : (T_bucket, 4*H)   VMEM scratch for the hoisted input projection
    """
    H = HIDDEN_SIZE
    n = seq_ref[0]

    # Hoisted input projection for ALL timesteps (one MXU dot instead of T),
    # stored to VMEM scratch so its live range is bounded.
    xp_ref[...] = (
        jnp.dot(x_ref[...], wih_ref[...], preferred_element_type=jnp.float32)
        + b_ref[...]
    )  # (T_bucket, 4H) f32

    whh = whh_ref[...]  # (H, 4H) bf16, resident across the loop

    def step(t, carry):
        h, c = carry
        gates = xp_ref[pl.ds(t, 1), :] + jnp.dot(
            h.astype(jnp.bfloat16), whh, preferred_element_type=jnp.float32
        )  # (1, 4H) f32
        # ONE sigmoid over all 4H lanes; g-gate columns were pre-scaled by 2 so
        # tanh(g_raw) == 2*sigmoid(2*g_raw) - 1 == 2*s[3H:4H] - 1 (one VPU fma).
        s = jax.nn.sigmoid(gates)
        i_g = s[:, 0 * H:1 * H]
        f_g = s[:, 1 * H:2 * H]
        o_g = s[:, 2 * H:3 * H]
        g_g = 2.0 * s[:, 3 * H:4 * H] - 1.0
        c = f_g * c + i_g * g_g
        h = o_g * jnp.tanh(c)
        return h, c

    # PyTorch forward never feeds `hidden` into self.lstm -> start from zeros.
    h0 = jnp.zeros((1, H), jnp.float32)
    c0 = jnp.zeros((1, H), jnp.float32)
    h, c = lax.fori_loop(0, n, step, (h0, c0))

    # Linear head on the last timestep's output (lstm_out[-1, :, :] == h_T).
    logits = (
        jnp.dot(h, wlin_ref[...], preferred_element_type=jnp.float32)
        + blin_ref[...]
    )  # (1, O)

    # LogSoftmax over dim=1.
    m = jnp.max(logits, axis=1, keepdims=True)
    lse = jnp.log(jnp.sum(jnp.exp(logits - m), axis=1, keepdims=True)) + m
    out_ref[...] = logits - lse
    h_out_ref[...] = h
    c_out_ref[...] = c


def _vmem_spec():
    return pl.BlockSpec(memory_space=pltpu.MemorySpace.VMEM)


def _smem_spec():
    return pl.BlockSpec(memory_space=pltpu.MemorySpace.SMEM)


def _forward_impl(seq, x, wih_t, whh_t, b, wlin_t, blin):
    t_bucket = x.shape[0]
    return pl.pallas_call(
        _lstm_classify_kernel,
        out_shape=(
            jax.ShapeDtypeStruct((1, OUTPUT_SIZE), jnp.float32),
            jax.ShapeDtypeStruct((1, HIDDEN_SIZE), jnp.float32),
            jax.ShapeDtypeStruct((1, HIDDEN_SIZE), jnp.float32),
        ),
        in_specs=[_smem_spec()] + [_vmem_spec()] * 6,
        out_specs=(_vmem_spec(), _vmem_spec(), _vmem_spec()),
        scratch_shapes=[pltpu.VMEM((t_bucket, 4 * HIDDEN_SIZE), jnp.float32)],
    )(seq, x, wih_t, whh_t, b, wlin_t, blin)


_forward = jax.jit(_forward_impl)


def prepare_params(params):
    """One-time weight prep (permute gates, scale g-gate, transpose, pad, bf16)."""
    H, I, O = HIDDEN_SIZE, INPUT_SIZE, OUTPUT_SIZE
    # PyTorch gate rows [i, f, g, o] -> [i, f, o, g].
    perm = jnp.concatenate([
        jnp.arange(0 * H, 1 * H),
        jnp.arange(1 * H, 2 * H),
        jnp.arange(3 * H, 4 * H),
        jnp.arange(2 * H, 3 * H),
    ])
    # Scale the g-gate (last H rows after permutation) by 2 so that
    # tanh(g) can be recovered from the shared sigmoid: tanh(x) = 2*sig(2x)-1.
    scale = jnp.concatenate([jnp.ones((3 * H,), jnp.float32),
                             jnp.full((H,), 2.0, jnp.float32)])

    w_ih = params["w_ih"][perm, :] * scale[:, None]        # (4H, I)
    w_hh = params["w_hh"][perm, :] * scale[:, None]        # (4H, H)
    b = ((params["b_ih"] + params["b_hh"])[perm] * scale)
    b = b.reshape(1, 4 * H).astype(jnp.float32)

    wih_t = jnp.pad(w_ih.T.astype(jnp.float32),
                    ((0, _INPUT_PAD - I), (0, 0))).astype(jnp.bfloat16)  # (64, 4H)
    whh_t = w_hh.T.astype(jnp.bfloat16)                    # (H, 4H)
    wlin_t = params["w_lin"].T.astype(jnp.float32)         # (H, O)
    blin = params["b_lin"].reshape(1, O).astype(jnp.float32)

    prepped = {"wih_t": wih_t, "whh_t": whh_t, "b": b,
               "wlin_t": wlin_t, "blin": blin}
    jax.block_until_ready(prepped)
    return prepped


def char_rnn_classify(inputs, hidden, prepped):
    """JAX/Pallas equivalent of CharRNNClassify.forward.

    inputs : (1, T, INPUT_SIZE) — tensor the PyTorch module views into
                                  (T, 1, INPUT_SIZE) before the LSTM.
    hidden : accepted for signature parity; the PyTorch forward ignores it.
    prepped: output of prepare_params(params) (computed once).
    """
    del hidden  # matches PyTorch: self.lstm is called without the hidden arg
    T = inputs.shape[1]
    T_bucket = _bucket_len(T)

    # Time-major input, zero-padded to (T_bucket, 64), bf16 operands for the MXU.
    x = inputs.reshape(T, INPUT_SIZE).astype(jnp.float32)
    x = jnp.pad(x, ((0, T_bucket - T), (0, _INPUT_PAD - INPUT_SIZE)))
    x = x.astype(jnp.bfloat16)
    seq = jnp.array([T], jnp.int32)

    out, h_n, c_n = _forward(seq, x, prepped["wih_t"], prepped["whh_t"],
                             prepped["b"], prepped["wlin_t"], prepped["blin"])

    # hidden is ((num_layers=1, batch=1, H), (1, 1, H)) like PyTorch's LSTM.
    return out, (h_n.reshape(1, 1, HIDDEN_SIZE), c_n.reshape(1, 1, HIDDEN_SIZE))


def _reference(inputs, params):
    """Pure-JAX f32 reference of the PyTorch forward (for validation)."""
    H = HIDDEN_SIZE
    T = inputs.shape[1]
    x = inputs.reshape(T, INPUT_SIZE).astype(jnp.float32)
    b = params["b_ih"] + params["b_hh"]
    h = jnp.zeros((H,), jnp.float32)
    c = jnp.zeros((H,), jnp.float32)
    for t in range(T):
        g = x[t] @ params["w_ih"].T + h @ params["w_hh"].T + b
        i_g = jax.nn.sigmoid(g[0 * H:1 * H])
        f_g = jax.nn.sigmoid(g[1 * H:2 * H])
        g_g = jnp.tanh(g[2 * H:3 * H])
        o_g = jax.nn.sigmoid(g[3 * H:4 * H])
        c = f_g * c + i_g * g_g
        h = o_g * jnp.tanh(c)
    logits = h @ params["w_lin"].T + params["b_lin"]
    out = jax.nn.log_softmax(logits)[None, :]
    return out, h[None, None, :], c[None, None, :]


def init_params(key):
    """Parameter init mirroring nn.LSTM / nn.Linear shapes, U(-1/sqrt(H), 1/sqrt(H))."""
    H, I, O = HIDDEN_SIZE, INPUT_SIZE, OUTPUT_SIZE
    k = 1.0 / math.sqrt(H)
    keys = jax.random.split(key, 6)
    return {
        "w_ih": jax.random.uniform(keys[0], (4 * H, I), jnp.float32, -k, k),
        "w_hh": jax.random.uniform(keys[1], (4 * H, H), jnp.float32, -k, k),
        "b_ih": jax.random.uniform(keys[2], (4 * H,), jnp.float32, -k, k),
        "b_hh": jax.random.uniform(keys[3], (4 * H,), jnp.float32, -k, k),
        "w_lin": jax.random.uniform(keys[4], (O, H), jnp.float32, -k, k),
        "b_lin": jax.random.uniform(keys[5], (O,), jnp.float32, -k, k),
    }


if __name__ == "__main__":
    key = jax.random.PRNGKey(0)
    k_param, k_x1, k_x2, k_h = jax.random.split(key, 4)

    params = init_params(k_param)
    prepped = prepare_params(params)          # one-time weight prep
    hidden = jax.random.normal(k_h, (1, HIDDEN_SIZE), jnp.float32)  # unused

    # Two different lengths in the same 16-bucket -> same compiled kernel,
    # validating both the dynamic trip count and the no-recompile path.
    for seq_len, kx in ((8, k_x1), (11, k_x2)):
        inputs = jax.random.normal(kx, (1, seq_len, INPUT_SIZE), jnp.float32)

        out, (h_n, c_n) = char_rnn_classify(inputs, hidden, prepped)
        jax.block_until_ready((out, h_n, c_n))

        assert out.shape == (1, OUTPUT_SIZE)
        assert h_n.shape == (1, 1, HIDDEN_SIZE) and c_n.shape == (1, 1, HIDDEN_SIZE)
        # log-softmax sanity: probabilities sum to ~1
        assert abs(float(jnp.sum(jnp.exp(out))) - 1.0) < 1e-3

        # Validate against the f32 pure-JAX reference (loose tol: bf16 MXU operands).
        ref_out, ref_h, ref_c = _reference(inputs, params)
        assert float(jnp.max(jnp.abs(out - ref_out))) < 5e-2
        assert float(jnp.max(jnp.abs(h_n - ref_h))) < 5e-2
        assert float(jnp.max(jnp.abs(c_n - ref_c))) < 5e-2

    print("KERNEL_OK")
</pallas_src>

<mosaic_0001>
module attributes {stable_mosaic.version = 11 : i64} {
  func.func @_lstm_classify_kernel(%arg0: memref<1xi32, #tpu.memory_space<smem>>, %arg1: memref<16x64xbf16, #tpu.memory_space<vmem>>, %arg2: memref<64x256xbf16, #tpu.memory_space<vmem>>, %arg3: memref<64x256xbf16, #tpu.memory_space<vmem>>, %arg4: memref<1x256xf32, #tpu.memory_space<vmem>>, %arg5: memref<64x9xf32, #tpu.memory_space<vmem>>, %arg6: memref<1x9xf32, #tpu.memory_space<vmem>>, %arg7: memref<1x9xf32, #tpu.memory_space<vmem>>, %arg8: memref<1x64xf32, #tpu.memory_space<vmem>>, %arg9: memref<1x64xf32, #tpu.memory_space<vmem>>, %arg10: memref<16x256xf32, #tpu.memory_space<vmem>>) attributes {dimension_semantics = [], scalar_prefetch = 0 : i64, scratch_operands = 1 : i64, tpu.core_type = #tpu.core_type<tc>} {
    %c0 = arith.constant 0 : index
    %0 = memref.load %arg0[%c0] : memref<1xi32, #tpu.memory_space<smem>>
    %c0_0 = arith.constant 0 : index
    %c0_1 = arith.constant 0 : index
    %1 = vector.load %arg1[%c0_0, %c0_1] : memref<16x64xbf16, #tpu.memory_space<vmem>>, vector<16x64xbf16>
    %c0_2 = arith.constant 0 : index
    %c0_3 = arith.constant 0 : index
    %2 = vector.load %arg2[%c0_2, %c0_3] : memref<64x256xbf16, #tpu.memory_space<vmem>>, vector<64x256xbf16>
    %cst = arith.constant dense<0.000000e+00> : vector<16x256xf32>
    %3 = tpu.matmul %1, %2, %cst {dimension_numbers = #tpu.dot_dimension_numbers<[1], [0], [0], [1], [0, 0, 1, 1], [], []>} : vector<16x64xbf16>, vector<64x256xbf16>, vector<16x256xf32> -> vector<16x256xf32>
    %c0_4 = arith.constant 0 : index
    %c0_5 = arith.constant 0 : index
    %4 = vector.load %arg4[%c0_4, %c0_5] : memref<1x256xf32, #tpu.memory_space<vmem>>, vector<1x256xf32>
    %5 = vector.broadcast %4 : vector<1x256xf32> to vector<16x256xf32>
    %6 = arith.addf %3, %5 : vector<16x256xf32>
    %c0_6 = arith.constant 0 : index
    %c0_7 = arith.constant 0 : index
    %7 = vector.load %arg10[%c0_6, %c0_7] : memref<16x256xf32, #tpu.memory_space<vmem>>, vector<16x256xf32>
    tpu.vector_store %arg10[%c0_6, %c0_7], %6 {strides = array<i32>} : memref<16x256xf32, #tpu.memory_space<vmem>>, vector<16x256xf32>,
    %c0_8 = arith.constant 0 : index
    %c0_9 = arith.constant 0 : index
    %8 = vector.load %arg3[%c0_8, %c0_9] : memref<64x256xbf16, #tpu.memory_space<vmem>>, vector<64x256xbf16>
    %cst_10 = arith.constant 0.000000e+00 : f32
    %9 = vector.broadcast %cst_10 : f32 to vector<1x64xf32>
    %cst_11 = arith.constant 0.000000e+00 : f32
    %10 = vector.broadcast %cst_11 : f32 to vector<1x64xf32>
    %c0_i32 = arith.constant 0 : i32
    %11 = arith.subi %0, %c0_i32 : i32
    %12 = arith.addi %c0_i32, %11 : i32
    %c1_i32 = arith.constant 1 : i32
    %13:2 = scf.for %arg11 = %c0_i32 to %12 step %c1_i32 iter_args(%arg12 = %9, %arg13 = %10) -> (vector<1x64xf32>, vector<1x64xf32>)  : i32 {
      %32 = arith.index_cast %arg11 : i32 to index
      %c0_25 = arith.constant 0 : index
      %33 = vector.load %arg10[%32, %c0_25] : memref<16x256xf32, #tpu.memory_space<vmem>>, vector<1x256xf32>
      %34 = arith.truncf %arg12 : vector<1x64xf32> to vector<1x64xbf16>
      %cst_26 = arith.constant dense<0.000000e+00> : vector<1x256xf32>
      %35 = tpu.matmul %34, %8, %cst_26 {dimension_numbers = #tpu.dot_dimension_numbers<[1], [0], [0], [1], [0, 0, 1, 1], [], []>} : vector<1x64xbf16>, vector<64x256xbf16>, vector<1x256xf32> -> vector<1x256xf32>
      %36 = arith.addf %33, %35 : vector<1x256xf32>
      %37 = arith.negf %36 : vector<1x256xf32>
      %38 = math.exp %37 : vector<1x256xf32>
      %cst_27 = arith.constant 1.000000e+00 : f32
      %39 = vector.broadcast %cst_27 : f32 to vector<1x256xf32>
      %40 = arith.addf %39, %38 : vector<1x256xf32>
      %41 = arith.divf %39, %40 : vector<1x256xf32>
      %42 = vector.extract_strided_slice %41 {offsets = [0, 0], sizes = [1, 64], strides = [1, 1]} : vector<1x256xf32> to vector<1x64xf32>
      %43 = vector.extract_strided_slice %41 {offsets = [0, 64], sizes = [1, 64], strides = [1, 1]} : vector<1x256xf32> to vector<1x64xf32>
      %44 = vector.extract_strided_slice %41 {offsets = [0, 128], sizes = [1, 64], strides = [1, 1]} : vector<1x256xf32> to vector<1x64xf32>
      %45 = vector.extract_strided_slice %41 {offsets = [0, 192], sizes = [1, 64], strides = [1, 1]} : vector<1x256xf32> to vector<1x64xf32>
      %cst_28 = arith.constant 2.000000e+00 : f32
      %46 = vector.broadcast %cst_28 : f32 to vector<1x64xf32>
      %47 = arith.mulf %46, %45 : vector<1x64xf32>
      %cst_29 = arith.constant 1.000000e+00 : f32
      %48 = vector.broadcast %cst_29 : f32 to vector<1x64xf32>
      %49 = arith.subf %47, %48 : vector<1x64xf32>
      %50 = arith.mulf %43, %arg13 : vector<1x64xf32>
      %51 = arith.mulf %42, %49 : vector<1x64xf32>
      %52 = arith.addf %50, %51 : vector<1x64xf32>
      %53 = math.tanh %52 : vector<1x64xf32>
      %54 = arith.mulf %44, %53 : vector<1x64xf32>
      scf.yield %54, %52 : vector<1x64xf32>, vector<1x64xf32>
    }
    %c0_12 = arith.constant 0 : index
    %c0_13 = arith.constant 0 : index
    %14 = vector.load %arg5[%c0_12, %c0_13] : memref<64x9xf32, #tpu.memory_space<vmem>>, vector<64x9xf32>
    %cst_14 = arith.constant dense<0.000000e+00> : vector<1x9xf32>
    %15 = tpu.matmul %13#0, %14, %cst_14 {dimension_numbers = #tpu.dot_dimension_numbers<[1], [0], [0], [1], [0, 0, 1, 1], [], []>} : vector<1x64xf32>, vector<64x9xf32>, vector<1x9xf32> -> vector<1x9xf32>
    %c0_15 = arith.constant 0 : index
    %c0_16 = arith.constant 0 : index
    %16 = vector.load %arg6[%c0_15, %c0_16] : memref<1x9xf32, #tpu.memory_space<vmem>>, vector<1x9xf32>
    %17 = arith.addf %15, %16 : vector<1x9xf32>
    %cst_17 = arith.constant dense<0xFF800000> : vector<1xf32>
    %18 = vector.multi_reduction <maximumf>, %17, %cst_17 [1] : vector<1x9xf32> to vector<1xf32>
    %19 = vector.shape_cast %18 : vector<1xf32> to vector<1x1xf32>
    %20 = vector.broadcast %19 : vector<1x1xf32> to vector<1x9xf32>
    %21 = arith.subf %17, %20 : vector<1x9xf32>
    %22 = math.exp %21 : vector<1x9xf32>
    %cst_18 = arith.constant dense<0.000000e+00> : vector<1xf32>
    %23 = vector.multi_reduction <add>, %22, %cst_18 [1] : vector<1x9xf32> to vector<1xf32>
    %24 = vector.shape_cast %23 : vector<1xf32> to vector<1x1xf32>
    %25 = math.log %24 : vector<1x1xf32>
    %26 = arith.addf %25, %19 : vector<1x1xf32>
    %27 = vector.broadcast %26 : vector<1x1xf32> to vector<1x9xf32>
    %28 = arith.subf %17, %27 : vector<1x9xf32>
    %c0_19 = arith.constant 0 : index
    %c0_20 = arith.constant 0 : index
    %29 = vector.load %arg7[%c0_19, %c0_20] : memref<1x9xf32, #tpu.memory_space<vmem>>, vector<1x9xf32>
    tpu.vector_store %arg7[%c0_19, %c0_20], %28 {strides = array<i32>} : memref<1x9xf32, #tpu.memory_space<vmem>>, vector<1x9xf32>,
    %c0_21 = arith.constant 0 : index
    %c0_22 = arith.constant 0 : index
    %30 = vector.load %arg8[%c0_21, %c0_22] : memref<1x64xf32, #tpu.memory_space<vmem>>, vector<1x64xf32>
    tpu.vector_store %arg8[%c0_21, %c0_22], %13#0 {strides = array<i32>} : memref<1x64xf32, #tpu.memory_space<vmem>>, vector<1x64xf32>,
    %c0_23 = arith.constant 0 : index
    %c0_24 = arith.constant 0 : index
    %31 = vector.load %arg9[%c0_23, %c0_24] : memref<1x64xf32, #tpu.memory_space<vmem>>, vector<1x64xf32>
    tpu.vector_store %arg9[%c0_23, %c0_24], %13#1 {strides = array<i32>} : memref<1x64xf32, #tpu.memory_space<vmem>>, vector<1x64xf32>,
    return
  }
}

</mosaic_0001>

<llo_original>
// kernel: _forward_impl.1
$region0: #{_forward_impl.1}
  #allocation0 [shape = 'u32[]', space=smem, size = 0x4, offset = 0x4, fixed_abs, tag = 'smem constant byte address 0x4 - core index']
  #allocation1 [shape = 'u32[72,128]{1,0:T(1,128)}', space=vmem, size = 0x9000, scoped, tag = 'internal scratch']
  #allocation2 [shape = 'f32[16,256]{1,0:T(8,128)}', space=vmem, size = 0x4000, scoped, tag = 'scratch operand']
  #allocation3 [shape = 's32[1]{0:T(128)S(6)}', space=smem, size = 0x200, scoped, tag = 'scoped memory for _forward_impl.1']
  %s0 = inlined_call_operand.<no memory space> [shape: s32[1], index: 0, kind: input, shape index: {}]
  %s1 = inlined_call_operand.vmem [shape: bf16[16,64], index: 1, kind: input, shape index: {}]
  %s2 = inlined_call_operand.vmem [shape: bf16[64,256], index: 2, kind: input, shape index: {}]
  %s3 = inlined_call_operand.hbm [shape: bf16[64,256], index: 3, kind: input, shape index: {}]
  %s4 = inlined_call_operand.vmem [shape: f32[1,256], index: 4, kind: input, shape index: {}]
  %s5 = inlined_call_operand.vmem [shape: f32[64,9], index: 5, kind: input, shape index: {}]
  %s6 = inlined_call_operand.vmem [shape: f32[1,9], index: 6, kind: input, shape index: {}]
  %s7 = inlined_call_operand.hbm [shape: f32[1,9], index: 7, kind: output, shape index: {0}]
  %s8 = inlined_call_operand.hbm [shape: f32[1,64], index: 8, kind: output, shape index: {1}]
  %s9 = inlined_call_operand.hbm [shape: f32[1,64], index: 9, kind: output, shape index: {2}]
  %10 = xla_tuple %s7, %s8, %s9
  %s11 = sld [smem:[#allocation0]]
  $region65: #{_forward_impl.1} parent=0
    _
  %s13 = ssub.s32 1, %s11
  %s14 = scalar_select 0, %s13, %s11
  %15 = sst [smem:[#allocation3]] %s0
  $region1: #{_forward_impl.1} parent=0
    #allocation4 [shape = 'u8[32768]{0}', space=vmem, size = 0x8000, scoped, tag = 'input window, operand 3, single buffered']
    #allocation5 [shape = 's32[1]{0}', space=sflag, size = 0x4, scoped, tag = 'scoped memory for _forward_impl.1']
    #allocation6 [shape = 's32[1]{0}', space=sflag, size = 0x4, scoped, tag = 'scoped memory for _forward_impl.1']
    #allocation7 [shape = 'u8[512]{0}', space=vmem, size = 0x400, scoped, tag = 'output window, operand 0, single buffered']
    #allocation8 [shape = 'u8[512]{0}', space=vmem, size = 0x400, scoped, tag = 'output window, operand 1, single buffered']
    #allocation9 [shape = 's32[1]{0}', space=sflag, size = 0x4, scoped, tag = 'scoped memory for _forward_impl.1']
    #allocation10 [shape = 'u8[512]{0}', space=vmem, size = 0x400, scoped, tag = 'output window, operand 2, single buffered']
    %16 = vsyncpa [#allocation5], 0
    %17 = vsyncpa [#allocation6], 0
    %18 = vsyncpa [#allocation9], 0
    // Predicated region
    $region2: #{_forward_impl.1} parent=1 // pred_check
      _
    $region3: #{_forward_impl.1} parent=1 // pred_check_branch
      %20 = sbr.rel (0) target = $region5
    $region4: #{_forward_impl.1} parent=1 // pred_region
      _
    $region5: #{_forward_impl.1} parent=1 // pred_fallthru
      _
    // Predicated region
    $region6: #{_forward_impl.1} parent=1 // pred_check
      _
    $region7: #{_forward_impl.1} parent=1 // pred_check_branch
      %22 = sbr.rel (0) target = $region9
    $region8: #{_forward_impl.1} parent=1 // pred_region
      _
    $region9: #{_forward_impl.1} parent=1 // pred_fallthru
      _
    // Predicated region
    $region10: #{_forward_impl.1} parent=1 // pred_check
      _
    $region11: #{_forward_impl.1} parent=1 // pred_check_branch
      %24 = sbr.rel (0) target = $region13
    $region12: #{_forward_impl.1} parent=1 // pred_region
      _
    $region13: #{_forward_impl.1} parent=1 // pred_fallthru
      _
    // Predicated region
    $region14: #{_forward_impl.1} parent=1 // pred_check
      _
    $region15: #{_forward_impl.1} parent=1 // pred_check_branch
      %26 = sbr.rel (0) target = $region17
    $region16: #{_forward_impl.1} parent=1 // pred_region
      %28 = vsyncadd [#allocation5], 0
      %s29 = sshll.u32 %s3, 4
      %s30 = int_to_ptr.hbm [resolvable:$true] %s29
      %s31 = sshll.u32 [#allocation4], 4
      %s32 = int_to_ptr.vmem [resolvable:$true] %s31
      %37 = dma.hbm_to_vmem [thread:$0]  %s30, 1024, %s32, [#allocation5], 128, 128, 8
    $region17: #{_forward_impl.1} parent=1 // pred_fallthru
      _
    // Predicated region
    $region18: #{_forward_impl.1} parent=1 // pred_check
      _
    $region19: #{_forward_impl.1} parent=1 // pred_check_branch
      %39 = sbr.rel (0) target = $region21
    $region20: #{_forward_impl.1} parent=1 // pred_region
      _
    $region21: #{_forward_impl.1} parent=1 // pred_fallthru
      _
    // Predicated region
    $region22: #{_forward_impl.1} parent=1 // pred_check
      _
    $region23: #{_forward_impl.1} parent=1 // pred_check_branch
      %41 = sbr.rel (0) target = $region25
    $region24: #{_forward_impl.1} parent=1 // pred_region
      _
    $region25: #{_forward_impl.1} parent=1 // pred_fallthru
      _
    // Predicated region
    $region26: #{_forward_impl.1} parent=1 // pred_check
      _
    $region27: #{_forward_impl.1} parent=1 // pred_check_branch
      %43 = sbr.rel (0) target = $region29
    $region28: #{_forward_impl.1} parent=1 // pred_region
      _
    $region29: #{_forward_impl.1} parent=1 // pred_fallthru
      _
    // Predicated region
    $region30: #{_forward_impl.1} parent=1 // pred_check
      _
    $region31: #{_forward_impl.1} parent=1 // pred_check_branch
      %45 = sbr.rel (0) target = $region33
    $region32: #{_forward_impl.1} parent=1 // pred_region
      %47 = dma.done [#allocation5], 1024
    $region33: #{_forward_impl.1} parent=1 // pred_fallthru
      _
    %s49 = sld [smem:[#allocation3]]
    %v50 = vld [vmem:[%s1] sm:$0xf]
    %v51 = vld [vmem:[%s1 + $0x4] sm:$0xf]
    %v52 = vld [vmem:[%s2] sm:$0xff]
    %v53 = vld [vmem:[%s2 + $0x8] sm:$0xff]
    %v54 = vld [vmem:[%s2 + $0x10] sm:$0xff]
    %v55 = vld [vmem:[%s2 + $0x18] sm:$0xff]
    %v56 = vld [vmem:[%s2 + $0x20] sm:$0xff]
    %v57 = vld [vmem:[%s2 + $0x28] sm:$0xff]
    %v58 = vld [vmem:[%s2 + $0x30] sm:$0xff]
    %v59 = vld [vmem:[%s2 + $0x38] sm:$0xff]
    %v60 = vld [vmem:[%s4] sm:$0x3]
    %v62 = vperm.slane %v60, 0
    %v63 = vperm.slane %v60, 1
    %v68 = vunpack.c.l.b16 %v50
    %v69 = vunpack.c.l.b16 %v51
    %v70 = vpack.c.b16 %v69, %v68
    %v79 = vunpack.c.l.b16 %v52
    %v80 = vunpack.c.h.b16 %v52
    %v81 = vunpack.c.l.b16 %v53
    %v82 = vunpack.c.h.b16 %v53
    %v83 = vunpack.c.l.b16 %v54
    %v84 = vunpack.c.h.b16 %v54
    %v85 = vunpack.c.l.b16 %v55
    %v86 = vunpack.c.h.b16 %v55
    %v87 = vunpack.c.l.b16 %v56
    %v88 = vunpack.c.h.b16 %v56
    %v89 = vunpack.c.l.b16 %v57
    %v90 = vunpack.c.h.b16 %v57
    %v91 = vunpack.c.l.b16 %v58
    %v92 = vunpack.c.h.b16 %v58
    %v93 = vunpack.c.l.b16 %v59
    %v94 = vunpack.c.h.b16 %v59
    %v95 = vpack.c.b16 %v81, %v79
    %v96 = vpack.c.b16 %v82, %v80
    %v97 = vpack.c.b16 %v85, %v83
    %v98 = vpack.c.b16 %v86, %v84
    %v99 = vpack.c.b16 %v89, %v87
    %v100 = vpack.c.b16 %v90, %v88
    %v101 = vpack.c.b16 %v93, %v91
    %v102 = vpack.c.b16 %v94, %v92
    %vm111 = vcmask 523264
    %v113 = vsel %vm111, %v70, 0
    %115 = vmatpush.bf16.msra.mxu0 0
    %116 = vmatpush.bf16.msra.mxu0 0
    %117 = vmatpush.bf16.msra.mxu0 0
    %118 = vmatpush.bf16.msra.mxu0 0
    %119 = vmatpush.bf16.msra.mxu0 %v101
    %120 = vmatpush.bf16.msra.mxu0 %v99
    %121 = vmatpush.bf16.msra.mxu0 %v97
    %122 = vmatpush.bf16.msra.mxu0 %v95
    %123 = vmatmul.bf16.gmra.mxu0 %v113
    %v124 = vpop.f32.mrf.mxu0
    %v125 = vadd.f32 %v62, %v124
    %v126 = vpop.f32.mrf.mxu0
    %v127 = vadd.f32 %v62, %v126
    %128 = vdwg.mxu0
    %129 = vmatpush.bf16.msra.mxu0 0
    %130 = vmatpush.bf16.msra.mxu0 0
    %131 = vmatpush.bf16.msra.mxu0 0
    %132 = vmatpush.bf16.msra.mxu0 0
    %133 = vmatpush.bf16.msra.mxu0 %v102
    %134 = vmatpush.bf16.msra.mxu0 %v100
    %135 = vmatpush.bf16.msra.mxu0 %v98
    %136 = vmatpush.bf16.msra.mxu0 %v96
    %137 = vmatmul.bf16.gmra.mxu0 %v113
    %v138 = vpop.f32.mrf.mxu0
    %v139 = vadd.f32 %v63, %v138
    %v140 = vpop.f32.mrf.mxu0
    %v141 = vadd.f32 %v63, %v140
    %142 = vdwg.mxu0
    %143 = vst [vmem:[#allocation2] sm:$0xff] %v125
    %144 = vst [vmem:[#allocation2 + $0x8] sm:$0xff] %v139
    %145 = vst [vmem:[#allocation2 + $0x10] sm:$0xff] %v127
    %146 = vst [vmem:[#allocation2 + $0x18] sm:$0xff] %v141
    %v147 = vld [vmem:[#allocation4] sm:$0xff]
    %v148 = vld [vmem:[#allocation4 + $0x8] sm:$0xff]
    %v149 = vld [vmem:[#allocation4 + $0x10] sm:$0xff]
    %v150 = vld [vmem:[#allocation4 + $0x18] sm:$0xff]
    %v151 = vld [vmem:[#allocation4 + $0x20] sm:$0xff]
    %v152 = vld [vmem:[#allocation4 + $0x28] sm:$0xff]
    %v153 = vld [vmem:[#allocation4 + $0x30] sm:$0xff]
    %v154 = vld [vmem:[#allocation4 + $0x38] sm:$0xff]
    // While loop
    $region34: #{_forward_impl.1} parent=1 // loop_pre_header
      _
    $region35: #{_forward_impl.1} parent=1 // loop_header
      %s156 = sphi 0, %s158
      %p157 = scmp.ge.s32.totalorder %s156, %s49
      %v161 = vphi 0.0, %v289
      %v162 = vphi 0.0, %v281
    $region36: #{_forward_impl.1} parent=1 // loop_header_branch
      %160 = sbr.rel (%p157) target = $region40
    $region37: #{_forward_impl.1} parent=1 // loop_body
      %s163 = sshra.s32 %s156, 3
      %s164 = sand.u32 %s156, 7
      %s165 = sshra.s32 %s156, 3
      %s166 = sand.u32 %s156, 7
      %s167 = smul.u32 %s163, 2
      %s168 = smul.u32 %s167, 8
      %s169 = sadd.s32 %s168, %s166
      %s170 = scalar_lea.vmem [#allocation2], %s169
      %v171 = vld [vmem:[%s170] ss:$8 sm:$0x3]
      %v172 = vpack.c.bf16 %v161, %v161
      %v181 = vunpack.c.l.b16 %v147
      %v182 = vunpack.c.h.b16 %v147
      %v183 = vunpack.c.l.b16 %v148
      %v184 = vunpack.c.h.b16 %v148
      %v185 = vunpack.c.l.b16 %v149
      %v186 = vunpack.c.h.b16 %v149
      %v187 = vunpack.c.l.b16 %v150
      %v188 = vunpack.c.h.b16 %v150
      %v189 = vunpack.c.l.b16 %v151
      %v190 = vunpack.c.h.b16 %v151
      %v191 = vunpack.c.l.b16 %v152
      %v192 = vunpack.c.h.b16 %v152
      %v193 = vunpack.c.l.b16 %v153
      %v194 = vunpack.c.h.b16 %v153
      %v195 = vunpack.c.l.b16 %v154
      %v196 = vunpack.c.h.b16 %v154
      %v197 = vpack.c.b16 %v183, %v181
      %v198 = vpack.c.b16 %v184, %v182
      %v199 = vpack.c.b16 %v187, %v185
      %v200 = vpack.c.b16 %v188, %v186
      %v201 = vpack.c.b16 %v191, %v189
      %v202 = vpack.c.b16 %v192, %v190
      %v203 = vpack.c.b16 %v195, %v193
      %v204 = vpack.c.b16 %v196, %v194
      %v214 = vsel %vm111, %v172, 0
      %216 = vmatpush.bf16.msra.mxu0 0
      %217 = vmatpush.bf16.msra.mxu0 0
      %218 = vmatpush.bf16.msra.mxu0 0
      %219 = vmatpush.bf16.msra.mxu0 0
      %220 = vmatpush.bf16.msra.mxu0 %v203
      %221 = vmatpush.bf16.msra.mxu0 %v201
      %222 = vmatpush.bf16.msra.mxu0 %v199
      %223 = vmatpush.bf16.msra.mxu0 %v197
      %224 = vmatmul.bf16.gmra.mxu0 %v214
      %v225 = vpop.f32.mrf.mxu0
      %v226 = vadd.f32 0.0, %v225
      %v227 = vpop.f32.mrf.mxu0
      %228 = vdwg.mxu0
      %229 = vmatpush.bf16.msra.mxu0 0
      %230 = vmatpush.bf16.msra.mxu0 0
      %231 = vmatpush.bf16.msra.mxu0 0
      %232 = vmatpush.bf16.msra.mxu0 0
      %233 = vmatpush.bf16.msra.mxu0 %v204
      %234 = vmatpush.bf16.msra.mxu0 %v202
      %235 = vmatpush.bf16.msra.mxu0 %v200
      %236 = vmatpush.bf16.msra.mxu0 %v198
      %237 = vmatmul.bf16.gmra.mxu0 %v214
      %v238 = vpop.f32.mrf.mxu0
      %v239 = vadd.f32 0.0, %v238
      %v240 = vpop.f32.mrf.mxu0
      %241 = vdwg.mxu0
      %v244 = vrot.slane %v239, 7
      %vm245 = vcmask 1040384
      %v246 = vsel %vm245, %v226, %v244
      %v248 = vadd.f32 %v171, %v246
      %v249 = vxor.u32 %v248, 2147483648
      %v250 = vmul.f32 %v249, 1.442695
      %v251 = vpow.pop %v250
      %v252 = vadd.f32 %v251, 1.0
      %v253 = vrcp.pop %v252
      %v254 = vmul.f32 %v252, %v253
      %v255 = vsub.f32 1.0, %v254
      %v256 = vmul.f32 %v253, %v255
      %v257 = vadd.f32 %v253, %v256
      %vm258 = vweird.f32 %v252
      %vm259 = vweird.f32 %v253
      %vm260 = vmor %vm258, %vm259
      %v261 = vsel %vm260, %v253, %v257
      %v262 = vand.u32 2147483647, %v252
      %vm263 = vcmp.eq.f32.partialorder %v262, 8.507059e+37
      %v264 = vand.u32 %v252, 2147483648
      %v265 = vor.u32 1.1754944e-38, %v264
      %v266 = vsel %vm263, %v265, %v261
      %v267 = vmul.f32 1.0, %v266
      %269 = vrot.lane.b32.xlu0 %v267, 64
      %v270 = vpop.permute.xlu0 %269
      %v271 = vrot.slane %v270, 1
      %v273 = vmul.f32 %v271, 2.0
      %v274 = vsub.f32 %v273, 1.0
      %v275 = vmul.f32 %v267, %v162
      %v276 = vmul.f32 %v267, %v274
      %278 = vrot.lane.b32.xlu0 %v276, 64
      %v279 = vpop.permute.xlu0 %278
      %v281 = vadd.f32 %v275, %v279
      %v282 = vtanh.pop %v281
      %v283 = vrot.slane %v267, 1
      %286 = vrot.lane.b32.xlu0 %v282, 64
      %v287 = vpop.permute.xlu0 %286
      %v289 = vmul.f32 %v283, %v287
    $region38: #{_forward_impl.1} parent=1 // loop_footer
      %s158 = sadd.s32 %s156, 1
    $region39: #{_forward_impl.1} parent=1 // loop_footer_branch
      %155 = sbr.rel target = $region35
    $region40: #{_forward_impl.1} parent=1 // loop_exit
      _
    %v290 = vld [vmem:[%s5] sm:$0xff]
    %v291 = vld [vmem:[%s5 + $0x8] sm:$0xff]
    %v292 = vld [vmem:[%s5 + $0x10] sm:$0xff]
    %v293 = vld [vmem:[%s5 + $0x18] sm:$0xff]
    %v294 = vld [vmem:[%s5 + $0x20] sm:$0xff]
    %v295 = vld [vmem:[%s5 + $0x28] sm:$0xff]
    %v296 = vld [vmem:[%s5 + $0x30] sm:$0xff]
    %v297 = vld [vmem:[%s5 + $0x38] sm:$0xff]
    %v298 = vld [vmem:[%s6] sm:$0x1]
    %v300 = vsel %vm111, %v161, 0
    %302 = vmatpush.msra.mxu0 0.0
    %303 = vmatpush.msra.mxu0 0.0
    %304 = vmatpush.msra.mxu0 0.0
    %305 = vmatpush.msra.mxu0 0.0
    %306 = vmatpush.msra.mxu0 0.0
    %307 = vmatpush.msra.mxu0 0.0
    %308 = vmatpush.msra.mxu0 0.0
    %309 = vmatpush.msra.mxu0 0.0
    %310 = vmatpush.msra.mxu0 %v297
    %311 = vmatpush.msra.mxu0 %v296
    %312 = vmatpush.msra.mxu0 %v295
    %313 = vmatpush.msra.mxu0 %v294
    %314 = vmatpush.msra.mxu0 %v293
    %315 = vmatpush.msra.mxu0 %v292
    %316 = vmatpush.msra.mxu0 %v291
    %317 = vmatpush.msra.mxu0 %v290
    %318 = vmatmul.f32.gmra.mxu0 %v300
    %v319 = vpop.f32.mrf.mxu0
    %v320 = vadd.f32 %v298, %v319
    %321 = vdwg.mxu0
    %vm322 = vcmask 65536
    %v323 = vsel %vm322, %v320, -inf
    %324 = vmax.xlane.f32.xlu0 %v323
    %v325 = vpop.xlane.xlu0 %324
    %v326 = vsub.f32 %v320, %v325
    %v327 = vmul.f32 %v326, 1.442695
    %v328 = vpow.pop %v327
    %v329 = vsel %vm322, %v328, 0.0
    %330 = vadd.xlane.f32.xlu0 %v329
    %v331 = vpop.xlane.xlu0 %330
    %v332 = vlog2.pop %v331
    %v333 = vmul.f32 %v332, 0.6931472
    %v334 = vadd.f32 %v333, %v325
    %v335 = vsub.f32 %v320, %v334
    %336 = vst.msk [vmem:[#allocation7] sm:$0x1] %vm322, %v335
    %vm337 = vcmask 516096
    %338 = vst.msk [vmem:[#allocation8] sm:$0x1] %vm337, %v161
    %v340 = vperm.slane %v162, 0
    %341 = vrot.lane.b32.xlu0 %v340, 64
    %v342 = vpop.permute.xlu0 %341
    %344 = vst.msk [vmem:[#allocation10] sm:$0x1] %vm337, %v342
    // Predicated region
    $region41: #{_forward_impl.1} parent=1 // pred_check
      _
    $region42: #{_forward_impl.1} parent=1 // pred_check_branch
      %346 = sbr.rel (0) target = $region44
    $region43: #{_forward_impl.1} parent=1 // pred_region
      %348 = vsyncadd [#allocation6], 0
      %s350 = sshll.u32 [#allocation7], 4
      %s351 = int_to_ptr.vmem [resolvable:$true] %s350
      %s352 = sshll.u32 %s7, 4
      %s353 = int_to_ptr.hbm [resolvable:$true] %s352
      %355 = dma.vmem_to_hbm [thread:$0]  %s351, 16, %s353, [#allocation6]
    $region44: #{_forward_impl.1} parent=1 // pred_fallthru
      _
    // Predicated region
    $region45: #{_forward_impl.1} parent=1 // pred_check
      _
    $region46: #{_forward_impl.1} parent=1 // pred_check_branch
      %357 = sbr.rel (0) target = $region48
    $region47: #{_forward_impl.1} parent=1 // pred_region
      %359 = vsyncadd [#allocation9], 0
      %s361 = sshll.u32 [#allocation8], 4
      %s362 = int_to_ptr.vmem [resolvable:$true] %s361
      %s363 = sshll.u32 %s8, 4
      %s364 = int_to_ptr.hbm [resolvable:$true] %s363
      %366 = dma.vmem_to_hbm [thread:$0]  %s362, 16, %s364, [#allocation9]
    $region48: #{_forward_impl.1} parent=1 // pred_fallthru
      _
    // Predicated region
    $region49: #{_forward_impl.1} parent=1 // pred_check
      _
    $region50: #{_forward_impl.1} parent=1 // pred_check_branch
      %368 = sbr.rel (0) target = $region52
    $region51: #{_forward_impl.1} parent=1 // pred_region
      %370 = vsyncadd [#allocation9], 0
      %s372 = sshll.u32 [#allocation10], 4
      %s373 = int_to_ptr.vmem [resolvable:$true] %s372
      %s374 = sshll.u32 %s9, 4
      %s375 = int_to_ptr.hbm [resolvable:$true] %s374
      %377 = dma.vmem_to_hbm [thread:$0]  %s373, 16, %s375, [#allocation9]
    $region52: #{_forward_impl.1} parent=1 // pred_fallthru
      _
    // Predicated region
    $region53: #{_forward_impl.1} parent=1 // pred_check
      _
    $region54: #{_forward_impl.1} parent=1 // pred_check_branch
      %379 = sbr.rel (0) target = $region56
    $region55: #{_forward_impl.1} parent=1 // pred_region
      %381 = dma.done [#allocation6], 16
    $region56: #{_forward_impl.1} parent=1 // pred_fallthru
      _
    // Predicated region
    $region57: #{_forward_impl.1} parent=1 // pred_check
      _
    $region58: #{_forward_impl.1} parent=1 // pred_check_branch
      %383 = sbr.rel (0) target = $region60
    $region59: #{_forward_impl.1} parent=1 // pred_region
      %385 = dma.done [#allocation9], 16
    $region60: #{_forward_impl.1} parent=1 // pred_fallthru
      _
    // Predicated region
    $region61: #{_forward_impl.1} parent=1 // pred_check
      _
    $region62: #{_forward_impl.1} parent=1 // pred_check_branch
      %387 = sbr.rel (0) target = $region64
    $region63: #{_forward_impl.1} parent=1 // pred_region
      %389 = dma.done [#allocation9], 16
    $region64: #{_forward_impl.1} parent=1 // pred_fallthru
      _
    %390 = vsyncpa [#allocation5], 1
    %391 = vsyncpa [#allocation6], 1
    %392 = vsyncpa [#allocation9], 1

</llo_original>
